<compile_context>
chip_gen: v7x
topology: tpu7x:2x2x1
jax: 0.10.0
libtpu: 0.0.40
codegen_flags: <defaults>
</compile_context>

<pallas_src>
import math
from functools import partial

import jax
import jax.numpy as jnp
from jax import lax
from jax.experimental import pallas as pl
from jax.experimental.pallas import tpu as pltpu

K = 3  # kernel_size == stride for nn.MaxPool2d(kernel_size=3)


def _pool_out_size(n: int, k: int, s: int, pad: int, ceil_mode: bool) -> int:
    """Replicates PyTorch's pooling output-size formula."""
    if ceil_mode:
        out = math.ceil((n + 2 * pad - k) / s) + 1
        if (out - 1) * s >= n + pad:  # last window must start inside the input
            out -= 1
    else:
        out = math.floor((n + 2 * pad - k) / s) + 1
    return max(out, 0)


def _dtype_min(dtype):
    """Identity element for max in this dtype (never materialized in HBM)."""
    if jnp.issubdtype(dtype, jnp.floating):
        return jnp.array(-jnp.inf, dtype)
    return jnp.array(jnp.iinfo(dtype).min, dtype)


def _make_kernel(H: int, W: int, out_h: int, oh_block: int, hsplit: bool):
    out_h_full = H // K
    rem_h = H - K * out_h_full
    out_w_full = W // K
    rem_w = W - K * out_w_full
    Wf = K * out_w_full
    W2 = W - (K - 1)  # valid window-start columns along W

    def w_pool_store(o_ref, hr, j):
        """hr: (p, W) max over one H-window; write wide output row j.

        Only columns 0,3,...,Wf-3 (full windows) and column Wf (ragged tail)
        are consumed by the wrapper's stride-3 compaction; other lanes are
        don't-care.
        """
        if out_w_full > 0:
            m = jnp.maximum(jnp.maximum(hr[:, 0:W2], hr[:, 1:W2 + 1]),
                            hr[:, 2:W2 + 2])
            o_ref[:, j, 0:W2] = m
        if rem_w > 0:  # ragged ceil_mode tail column-window (1 or 2 columns)
            t = hr[:, Wf:Wf + 1]
            if rem_w == 2:
                t = jnp.maximum(t, hr[:, Wf + 1:Wf + 2])
            o_ref[:, j, Wf:Wf + 1] = t

    if not hsplit:
        # Single grid axis over plane chunks; the block covers all of H.
        def kernel(x_ref, o_ref):
            for j in range(out_h_full):                  # static unroll (out_h <= 64)
                rows = x_ref[:, K * j:K * (j + 1), :]    # (p, 3, W) contiguous
                w_pool_store(o_ref, jnp.max(rows, axis=1), j)
            if rem_h > 0:                                # ragged ceil_mode tail rows
                tail = x_ref[:, K * out_h_full:H, :]     # (p, rem_h, W)
                hr = tail[:, 0, :]
                if rem_h == 2:
                    hr = jnp.maximum(hr, tail[:, 1, :])
                w_pool_store(o_ref, hr, out_h_full)

        return kernel

    # Two grid axes: (plane chunks, blocks of oh_block output rows).
    def kernel(x_ref, o_ref):
        hbase = pl.program_id(1) * (K * oh_block)        # first global input row
        fill = _dtype_min(o_ref.dtype)
        for j in range(oh_block):                        # static unroll (oh_block <= 64)
            rows = x_ref[:, K * j:K * (j + 1), :]        # (p, 3, W)
            if rem_h > 0:
                # Mask rows past the end of the image (ragged ceil_mode tail and
                # the padded region of a clipped last H-block).
                rid = hbase + K * j + lax.broadcasted_iota(jnp.int32, rows.shape, 1)
                rows = jnp.where(rid < H, rows, fill)
            w_pool_store(o_ref, jnp.max(rows, axis=1), j)

    return kernel


def _choose_blocks(P: int, H: int, W: int, out_h: int, itemsize: int):
    """Pick (p_block, oh_block, hsplit).

    Targets ~4 MiB input blocks (safe on v7x's 64 MiB VMEM, generous pipelining
    headroom on v5e/v6e) and >=2 grid steps so the pipeline is active and v7x
    can shard the "parallel" axis across its 2 TensorCores.
    """
    budget = 4 * 1024 * 1024
    plane_bytes = H * W * itemsize
    hsplit = plane_bytes > budget or out_h > 64
    if hsplit and out_h < 8:
        hsplit = False  # degenerate wide-and-short plane; keep whole H per block

    if not hsplit:
        cap = max(1, budget // max(plane_bytes, 1))
        min_steps = min(P, 4)
        p_block = max(1, min(P, cap, -(-P // min_steps)))
        return p_block, out_h, False

    row_bytes = K * W * itemsize                      # input bytes per output row
    oh_block = (budget // max(row_bytes, 1)) // 8 * 8
    oh_block = int(max(8, min(64, oh_block)))
    oh_block = max(8, min(oh_block, (out_h // 8) * 8))
    p_block = max(1, min(P, budget // max(K * oh_block * W * itemsize, 1)))
    return p_block, oh_block, True


@partial(jax.jit, static_argnames=("_force_blocks",))
def maxpool2d_ceil(x: jax.Array, _force_blocks=None) -> jax.Array:
    """MaxPool2d(kernel_size=3, stride=3, padding=0, ceil_mode=True) on NCHW."""
    N, C, H, W = x.shape
    P = N * C
    out_h = _pool_out_size(H, K, K, 0, ceil_mode=True)
    out_w = _pool_out_size(W, K, K, 0, ceil_mode=True)
    itemsize = jnp.dtype(x.dtype).itemsize

    if _force_blocks is not None:
        p_block, oh_block, hsplit = _force_blocks
    else:
        p_block, oh_block, hsplit = _choose_blocks(P, H, W, out_h, itemsize)

    xr = x.reshape(P, H, W)  # free reshape; no HBM transpose

    kernel = _make_kernel(H, W, out_h, oh_block, hsplit)

    if hsplit:
        grid = (pl.cdiv(P, p_block), pl.cdiv(out_h, oh_block))
        in_specs = [pl.BlockSpec((p_block, K * oh_block, W), lambda p, h: (p, h, 0))]
        out_specs = pl.BlockSpec((p_block, oh_block, W), lambda p, h: (p, h, 0))
        dims = ("parallel", "parallel")
        in_blk = p_block * K * oh_block * W * itemsize
        out_blk = p_block * oh_block * W * itemsize
    else:
        grid = (pl.cdiv(P, p_block),)
        in_specs = [pl.BlockSpec((p_block, H, W), lambda p: (p, 0, 0))]
        out_specs = pl.BlockSpec((p_block, out_h, W), lambda p: (p, 0, 0))
        dims = ("parallel",)
        in_blk = p_block * H * W * itemsize
        out_blk = p_block * out_h * W * itemsize

    vmem_limit = int(min(64 * 1024 * 1024,
                         max(32 * 1024 * 1024, 4 * (in_blk + out_blk))))

    y_wide = pl.pallas_call(
        kernel,
        out_shape=jax.ShapeDtypeStruct((P, out_h, W), x.dtype),
        grid=grid,
        in_specs=in_specs,
        out_specs=out_specs,
        compiler_params=pltpu.CompilerParams(
            dimension_semantics=dims,
            vmem_limit_bytes=vmem_limit,
        ),
        cost_estimate=pl.CostEstimate(
            flops=3 * P * H * W,
            transcendentals=0,
            bytes_accessed=(P * H * W + P * out_h * W) * itemsize,
        ),
    )(xr)

    # Stride-3 lane compaction of the small (P, out_h, W) slab: column 3*q holds
    # output column q (the ragged ceil_mode tail value sits at column Wf).
    y = y_wide[:, :, ::K][:, :, :out_w]
    return y.reshape(N, C, out_h, out_w)


def _reference_maxpool(x: jax.Array) -> jax.Array:
    """Pure-JAX reference (reduce_window) matching PyTorch ceil_mode semantics."""
    N, C, H, W = x.shape
    out_h = _pool_out_size(H, K, K, 0, ceil_mode=True)
    out_w = _pool_out_size(W, K, K, 0, ceil_mode=True)
    return lax.reduce_window(
        x,
        -jnp.inf,
        lax.max,
        window_dimensions=(1, 1, K, K),
        window_strides=(1, 1, K, K),
        padding=((0, 0), (0, 0), (0, out_h * K - H), (0, out_w * K - W)),
    )


if __name__ == "__main__":
    # Primary case (matches the module's expected input): N=2, C=4, H=W=16.
    x = jax.random.normal(jax.random.PRNGKey(0), (2, 4, 16, 16), dtype=jnp.float32)
    out = jax.block_until_ready(maxpool2d_ceil(x))
    ref = _reference_maxpool(x)
    assert out.shape == ref.shape, (out.shape, ref.shape)
    assert jnp.allclose(out, ref), "Pallas maxpool mismatch on (2,4,16,16)"

    # Exactly-divisible spatial dims + a partial plane chunk on the grid.
    x2 = jax.random.normal(jax.random.PRNGKey(1), (3, 5, 9, 12), dtype=jnp.float32)
    out2 = jax.block_until_ready(maxpool2d_ceil(x2))
    ref2 = _reference_maxpool(x2)
    assert out2.shape == ref2.shape
    assert jnp.allclose(out2, ref2), "Pallas maxpool mismatch on (3,5,9,12)"

    # Force the two-axis (plane, H-block) grid path to validate it too.
    x3 = jax.random.normal(jax.random.PRNGKey(2), (2, 3, 40, 36), dtype=jnp.float32)
    out3 = jax.block_until_ready(maxpool2d_ceil(x3, _force_blocks=(2, 8, True)))
    ref3 = _reference_maxpool(x3)
    assert out3.shape == ref3.shape
    assert jnp.allclose(out3, ref3), "Pallas maxpool mismatch on forced H-split path"

    print("KERNEL_OK")
</pallas_src>

<mosaic_0001>
module attributes {stable_mosaic.version = 11 : i64} {
  func.func @kernel(%arg0: i32, %arg1: memref<2x16x16xf32, #tpu.memory_space<vmem>>, %arg2: memref<2x6x16xf32, #tpu.memory_space<vmem>>) attributes {dimension_semantics = [#tpu.dimension_semantics<parallel>], iteration_bounds = array<i64: 4>, scalar_prefetch = 0 : i64, scratch_operands = 0 : i64, tpu.core_type = #tpu.core_type<tc>, window_params = [{transform_indices = @transform_0, window_bounds = array<i64: 2, 16, 16>}, {transform_indices = @transform_1, window_bounds = array<i64: 2, 6, 16>}]} {
    %c0 = arith.constant 0 : index
    %c0_0 = arith.constant 0 : index
    %c0_1 = arith.constant 0 : index
    %0 = vector.load %arg1[%c0, %c0_0, %c0_1] : memref<2x16x16xf32, #tpu.memory_space<vmem>>, vector<2x3x16xf32>
    %cst = arith.constant dense<0xFF800000> : vector<2x16xf32>
    %1 = vector.multi_reduction <maximumf>, %0, %cst [1] : vector<2x3x16xf32> to vector<2x16xf32>
    %2 = vector.extract_strided_slice %1 {offsets = [0, 0], sizes = [2, 14], strides = [1, 1]} : vector<2x16xf32> to vector<2x14xf32>
    %3 = vector.extract_strided_slice %1 {offsets = [0, 1], sizes = [2, 14], strides = [1, 1]} : vector<2x16xf32> to vector<2x14xf32>
    %4 = arith.maximumf %2, %3 : vector<2x14xf32>
    %5 = vector.extract_strided_slice %1 {offsets = [0, 2], sizes = [2, 14], strides = [1, 1]} : vector<2x16xf32> to vector<2x14xf32>
    %6 = arith.maximumf %4, %5 : vector<2x14xf32>
    %c0_2 = arith.constant 0 : index
    %c0_3 = arith.constant 0 : index
    %c0_4 = arith.constant 0 : index
    %7 = vector.load %arg2[%c0_2, %c0_3, %c0_4] : memref<2x6x16xf32, #tpu.memory_space<vmem>>, vector<2x1x14xf32>
    %8 = vector.shape_cast %7 : vector<2x1x14xf32> to vector<2x14xf32>
    %9 = vector.shape_cast %6 : vector<2x14xf32> to vector<2x1x14xf32>
    tpu.vector_store %arg2[%c0_2, %c0_3, %c0_4], %9 {strides = array<i32>} : memref<2x6x16xf32, #tpu.memory_space<vmem>>, vector<2x1x14xf32>,
    %10 = vector.extract_strided_slice %1 {offsets = [0, 15], sizes = [2, 1], strides = [1, 1]} : vector<2x16xf32> to vector<2x1xf32>
    %c0_5 = arith.constant 0 : index
    %c0_6 = arith.constant 0 : index
    %c15 = arith.constant 15 : index
    %11 = vector.load %arg2[%c0_5, %c0_6, %c15] : memref<2x6x16xf32, #tpu.memory_space<vmem>>, vector<2x1x1xf32>
    %12 = vector.shape_cast %11 : vector<2x1x1xf32> to vector<2x1xf32>
    %13 = vector.shape_cast %10 : vector<2x1xf32> to vector<2x1x1xf32>
    tpu.vector_store %arg2[%c0_5, %c0_6, %c15], %13 {strides = array<i32>} : memref<2x6x16xf32, #tpu.memory_space<vmem>>, vector<2x1x1xf32>,
    %c0_7 = arith.constant 0 : index
    %c3 = arith.constant 3 : index
    %c0_8 = arith.constant 0 : index
    %14 = vector.load %arg1[%c0_7, %c3, %c0_8] : memref<2x16x16xf32, #tpu.memory_space<vmem>>, vector<2x3x16xf32>
    %cst_9 = arith.constant dense<0xFF800000> : vector<2x16xf32>
    %15 = vector.multi_reduction <maximumf>, %14, %cst_9 [1] : vector<2x3x16xf32> to vector<2x16xf32>
    %16 = vector.extract_strided_slice %15 {offsets = [0, 0], sizes = [2, 14], strides = [1, 1]} : vector<2x16xf32> to vector<2x14xf32>
    %17 = vector.extract_strided_slice %15 {offsets = [0, 1], sizes = [2, 14], strides = [1, 1]} : vector<2x16xf32> to vector<2x14xf32>
    %18 = arith.maximumf %16, %17 : vector<2x14xf32>
    %19 = vector.extract_strided_slice %15 {offsets = [0, 2], sizes = [2, 14], strides = [1, 1]} : vector<2x16xf32> to vector<2x14xf32>
    %20 = arith.maximumf %18, %19 : vector<2x14xf32>
    %c0_10 = arith.constant 0 : index
    %c1 = arith.constant 1 : index
    %c0_11 = arith.constant 0 : index
    %21 = vector.load %arg2[%c0_10, %c1, %c0_11] : memref<2x6x16xf32, #tpu.memory_space<vmem>>, vector<2x1x14xf32>
    %22 = vector.shape_cast %21 : vector<2x1x14xf32> to vector<2x14xf32>
    %23 = vector.shape_cast %20 : vector<2x14xf32> to vector<2x1x14xf32>
    tpu.vector_store %arg2[%c0_10, %c1, %c0_11], %23 {strides = array<i32>} : memref<2x6x16xf32, #tpu.memory_space<vmem>>, vector<2x1x14xf32>,
    %24 = vector.extract_strided_slice %15 {offsets = [0, 15], sizes = [2, 1], strides = [1, 1]} : vector<2x16xf32> to vector<2x1xf32>
    %c0_12 = arith.constant 0 : index
    %c1_13 = arith.constant 1 : index
    %c15_14 = arith.constant 15 : index
    %25 = vector.load %arg2[%c0_12, %c1_13, %c15_14] : memref<2x6x16xf32, #tpu.memory_space<vmem>>, vector<2x1x1xf32>
    %26 = vector.shape_cast %25 : vector<2x1x1xf32> to vector<2x1xf32>
    %27 = vector.shape_cast %24 : vector<2x1xf32> to vector<2x1x1xf32>
    tpu.vector_store %arg2[%c0_12, %c1_13, %c15_14], %27 {strides = array<i32>} : memref<2x6x16xf32, #tpu.memory_space<vmem>>, vector<2x1x1xf32>,
    %c0_15 = arith.constant 0 : index
    %c6 = arith.constant 6 : index
    %c0_16 = arith.constant 0 : index
    %28 = vector.load %arg1[%c0_15, %c6, %c0_16] : memref<2x16x16xf32, #tpu.memory_space<vmem>>, vector<2x3x16xf32>
    %cst_17 = arith.constant dense<0xFF800000> : vector<2x16xf32>
    %29 = vector.multi_reduction <maximumf>, %28, %cst_17 [1] : vector<2x3x16xf32> to vector<2x16xf32>
    %30 = vector.extract_strided_slice %29 {offsets = [0, 0], sizes = [2, 14], strides = [1, 1]} : vector<2x16xf32> to vector<2x14xf32>
    %31 = vector.extract_strided_slice %29 {offsets = [0, 1], sizes = [2, 14], strides = [1, 1]} : vector<2x16xf32> to vector<2x14xf32>
    %32 = arith.maximumf %30, %31 : vector<2x14xf32>
    %33 = vector.extract_strided_slice %29 {offsets = [0, 2], sizes = [2, 14], strides = [1, 1]} : vector<2x16xf32> to vector<2x14xf32>
    %34 = arith.maximumf %32, %33 : vector<2x14xf32>
    %c0_18 = arith.constant 0 : index
    %c2 = arith.constant 2 : index
    %c0_19 = arith.constant 0 : index
    %35 = vector.load %arg2[%c0_18, %c2, %c0_19] : memref<2x6x16xf32, #tpu.memory_space<vmem>>, vector<2x1x14xf32>
    %36 = vector.shape_cast %35 : vector<2x1x14xf32> to vector<2x14xf32>
    %37 = vector.shape_cast %34 : vector<2x14xf32> to vector<2x1x14xf32>
    tpu.vector_store %arg2[%c0_18, %c2, %c0_19], %37 {strides = array<i32>} : memref<2x6x16xf32, #tpu.memory_space<vmem>>, vector<2x1x14xf32>,
    %38 = vector.extract_strided_slice %29 {offsets = [0, 15], sizes = [2, 1], strides = [1, 1]} : vector<2x16xf32> to vector<2x1xf32>
    %c0_20 = arith.constant 0 : index
    %c2_21 = arith.constant 2 : index
    %c15_22 = arith.constant 15 : index
    %39 = vector.load %arg2[%c0_20, %c2_21, %c15_22] : memref<2x6x16xf32, #tpu.memory_space<vmem>>, vector<2x1x1xf32>
    %40 = vector.shape_cast %39 : vector<2x1x1xf32> to vector<2x1xf32>
    %41 = vector.shape_cast %38 : vector<2x1xf32> to vector<2x1x1xf32>
    tpu.vector_store %arg2[%c0_20, %c2_21, %c15_22], %41 {strides = array<i32>} : memref<2x6x16xf32, #tpu.memory_space<vmem>>, vector<2x1x1xf32>,
    %c0_23 = arith.constant 0 : index
    %c9 = arith.constant 9 : index
    %c0_24 = arith.constant 0 : index
    %42 = vector.load %arg1[%c0_23, %c9, %c0_24] : memref<2x16x16xf32, #tpu.memory_space<vmem>>, vector<2x3x16xf32>
    %cst_25 = arith.constant dense<0xFF800000> : vector<2x16xf32>
    %43 = vector.multi_reduction <maximumf>, %42, %cst_25 [1] : vector<2x3x16xf32> to vector<2x16xf32>
    %44 = vector.extract_strided_slice %43 {offsets = [0, 0], sizes = [2, 14], strides = [1, 1]} : vector<2x16xf32> to vector<2x14xf32>
    %45 = vector.extract_strided_slice %43 {offsets = [0, 1], sizes = [2, 14], strides = [1, 1]} : vector<2x16xf32> to vector<2x14xf32>
    %46 = arith.maximumf %44, %45 : vector<2x14xf32>
    %47 = vector.extract_strided_slice %43 {offsets = [0, 2], sizes = [2, 14], strides = [1, 1]} : vector<2x16xf32> to vector<2x14xf32>
    %48 = arith.maximumf %46, %47 : vector<2x14xf32>
    %c0_26 = arith.constant 0 : index
    %c3_27 = arith.constant 3 : index
    %c0_28 = arith.constant 0 : index
    %49 = vector.load %arg2[%c0_26, %c3_27, %c0_28] : memref<2x6x16xf32, #tpu.memory_space<vmem>>, vector<2x1x14xf32>
    %50 = vector.shape_cast %49 : vector<2x1x14xf32> to vector<2x14xf32>
    %51 = vector.shape_cast %48 : vector<2x14xf32> to vector<2x1x14xf32>
    tpu.vector_store %arg2[%c0_26, %c3_27, %c0_28], %51 {strides = array<i32>} : memref<2x6x16xf32, #tpu.memory_space<vmem>>, vector<2x1x14xf32>,
    %52 = vector.extract_strided_slice %43 {offsets = [0, 15], sizes = [2, 1], strides = [1, 1]} : vector<2x16xf32> to vector<2x1xf32>
    %c0_29 = arith.constant 0 : index
    %c3_30 = arith.constant 3 : index
    %c15_31 = arith.constant 15 : index
    %53 = vector.load %arg2[%c0_29, %c3_30, %c15_31] : memref<2x6x16xf32, #tpu.memory_space<vmem>>, vector<2x1x1xf32>
    %54 = vector.shape_cast %53 : vector<2x1x1xf32> to vector<2x1xf32>
    %55 = vector.shape_cast %52 : vector<2x1xf32> to vector<2x1x1xf32>
    tpu.vector_store %arg2[%c0_29, %c3_30, %c15_31], %55 {strides = array<i32>} : memref<2x6x16xf32, #tpu.memory_space<vmem>>, vector<2x1x1xf32>,
    %c0_32 = arith.constant 0 : index
    %c12 = arith.constant 12 : index
    %c0_33 = arith.constant 0 : index
    %56 = vector.load %arg1[%c0_32, %c12, %c0_33] : memref<2x16x16xf32, #tpu.memory_space<vmem>>, vector<2x3x16xf32>
    %cst_34 = arith.constant dense<0xFF800000> : vector<2x16xf32>
    %57 = vector.multi_reduction <maximumf>, %56, %cst_34 [1] : vector<2x3x16xf32> to vector<2x16xf32>
    %58 = vector.extract_strided_slice %57 {offsets = [0, 0], sizes = [2, 14], strides = [1, 1]} : vector<2x16xf32> to vector<2x14xf32>
    %59 = vector.extract_strided_slice %57 {offsets = [0, 1], sizes = [2, 14], strides = [1, 1]} : vector<2x16xf32> to vector<2x14xf32>
    %60 = arith.maximumf %58, %59 : vector<2x14xf32>
    %61 = vector.extract_strided_slice %57 {offsets = [0, 2], sizes = [2, 14], strides = [1, 1]} : vector<2x16xf32> to vector<2x14xf32>
    %62 = arith.maximumf %60, %61 : vector<2x14xf32>
    %c0_35 = arith.constant 0 : index
    %c4 = arith.constant 4 : index
    %c0_36 = arith.constant 0 : index
    %63 = vector.load %arg2[%c0_35, %c4, %c0_36] : memref<2x6x16xf32, #tpu.memory_space<vmem>>, vector<2x1x14xf32>
    %64 = vector.shape_cast %63 : vector<2x1x14xf32> to vector<2x14xf32>
    %65 = vector.shape_cast %62 : vector<2x14xf32> to vector<2x1x14xf32>
    tpu.vector_store %arg2[%c0_35, %c4, %c0_36], %65 {strides = array<i32>} : memref<2x6x16xf32, #tpu.memory_space<vmem>>, vector<2x1x14xf32>,
    %66 = vector.extract_strided_slice %57 {offsets = [0, 15], sizes = [2, 1], strides = [1, 1]} : vector<2x16xf32> to vector<2x1xf32>
    %c0_37 = arith.constant 0 : index
    %c4_38 = arith.constant 4 : index
    %c15_39 = arith.constant 15 : index
    %67 = vector.load %arg2[%c0_37, %c4_38, %c15_39] : memref<2x6x16xf32, #tpu.memory_space<vmem>>, vector<2x1x1xf32>
    %68 = vector.shape_cast %67 : vector<2x1x1xf32> to vector<2x1xf32>
    %69 = vector.shape_cast %66 : vector<2x1xf32> to vector<2x1x1xf32>
    tpu.vector_store %arg2[%c0_37, %c4_38, %c15_39], %69 {strides = array<i32>} : memref<2x6x16xf32, #tpu.memory_space<vmem>>, vector<2x1x1xf32>,
    %c0_40 = arith.constant 0 : index
    %c15_41 = arith.constant 15 : index
    %c0_42 = arith.constant 0 : index
    %70 = vector.load %arg1[%c0_40, %c15_41, %c0_42] : memref<2x16x16xf32, #tpu.memory_space<vmem>>, vector<2x1x16xf32>
    %71 = vector.shape_cast %70 : vector<2x1x16xf32> to vector<2x16xf32>
    %72 = vector.extract_strided_slice %71 {offsets = [0, 0], sizes = [2, 14], strides = [1, 1]} : vector<2x16xf32> to vector<2x14xf32>
    %73 = vector.extract_strided_slice %71 {offsets = [0, 1], sizes = [2, 14], strides = [1, 1]} : vector<2x16xf32> to vector<2x14xf32>
    %74 = arith.maximumf %72, %73 : vector<2x14xf32>
    %75 = vector.extract_strided_slice %71 {offsets = [0, 2], sizes = [2, 14], strides = [1, 1]} : vector<2x16xf32> to vector<2x14xf32>
    %76 = arith.maximumf %74, %75 : vector<2x14xf32>
    %c0_43 = arith.constant 0 : index
    %c5 = arith.constant 5 : index
    %c0_44 = arith.constant 0 : index
    %77 = vector.load %arg2[%c0_43, %c5, %c0_44] : memref<2x6x16xf32, #tpu.memory_space<vmem>>, vector<2x1x14xf32>
    %78 = vector.shape_cast %77 : vector<2x1x14xf32> to vector<2x14xf32>
    %79 = vector.shape_cast %76 : vector<2x14xf32> to vector<2x1x14xf32>
    tpu.vector_store %arg2[%c0_43, %c5, %c0_44], %79 {strides = array<i32>} : memref<2x6x16xf32, #tpu.memory_space<vmem>>, vector<2x1x14xf32>,
    %80 = vector.extract_strided_slice %71 {offsets = [0, 15], sizes = [2, 1], strides = [1, 1]} : vector<2x16xf32> to vector<2x1xf32>
    %c0_45 = arith.constant 0 : index
    %c5_46 = arith.constant 5 : index
    %c15_47 = arith.constant 15 : index
    %81 = vector.load %arg2[%c0_45, %c5_46, %c15_47] : memref<2x6x16xf32, #tpu.memory_space<vmem>>, vector<2x1x1xf32>
    %82 = vector.shape_cast %81 : vector<2x1x1xf32> to vector<2x1xf32>
    %83 = vector.shape_cast %80 : vector<2x1xf32> to vector<2x1x1xf32>
    tpu.vector_store %arg2[%c0_45, %c5_46, %c15_47], %83 {strides = array<i32>} : memref<2x6x16xf32, #tpu.memory_space<vmem>>, vector<2x1x1xf32>,
    return
  }
  func.func @transform_0(%arg0: i32) -> (i32, i32, i32) {
    %c0_i32 = arith.constant 0 : i32
    %c0_i32_0 = arith.constant 0 : i32
    %c0_i32_1 = arith.constant 0 : i32
    return %arg0, %c0_i32, %c0_i32_0 : i32, i32, i32
  }
  func.func @transform_1(%arg0: i32) -> (i32, i32, i32) {
    %c0_i32 = arith.constant 0 : i32
    %c0_i32_0 = arith.constant 0 : i32
    %c0_i32_1 = arith.constant 0 : i32
    return %arg0, %c0_i32, %c0_i32_0 : i32, i32, i32
  }
}

</mosaic_0001>

<llo_original>
// kernel: maxpool2d_ceil.1
$region0: #{maxpool2d_ceil.1}
  #allocation0 [shape = 'u32[]', space=smem, size = 0x4, offset = 0x4, fixed_abs, tag = 'smem constant byte address 0x4 - core index']
  #allocation1 [shape = 'u32[144,128]{1,0:T(1,128)}', space=vmem, size = 0x12000, scoped, tag = 'internal scratch']
  %s0 = inlined_call_operand.hbm [shape: f32[8,16,16], index: 0, kind: input, shape index: {}]
  %s1 = inlined_call_operand.vmem [shape: f32[8,6,16], index: 1, kind: output, shape index: {}]
  %s2 = sld [smem:[#allocation0]]
  $region41: #{maxpool2d_ceil.1} parent=0
    _
  %s4 = ssub.s32 1, %s2
  %s5 = scalar_select 0, %s4, %s2
  $region1: #{maxpool2d_ceil.1} parent=0
    #allocation2 [shape = 'u8[32768]{0}', space=vmem, size = 0x8000, scoped, tag = 'input window, operand 0']
    #allocation3 [shape = 's32[2]{0}', space=sflag, size = 0x8, scoped, tag = 'scoped memory for maxpool2d_ceil.1']
    %6 = vsyncpa [#allocation3], 0
    %s7 = scalar_lea.sflag [#allocation3], 1
    %8 = vsyncpa %s7, 0
    loop: start=0, step=1, limit=6
    $region2: #{maxpool2d_ceil.1} parent=1 // loop_pre_header
      _
    $region3: #{maxpool2d_ceil.1} parent=1 // loop_header
      %s10 = sphi 0, %s14
      %p11 = scmp.ge.s32.totalorder %s10, 6
      %s20 = sphi 0, %s22
      %s23 = sphi 0, %s20
      %s24 = sphi 0, %s23
      %s40 = sphi 0, %s24
      %s46 = sphi 0, %s48
      %s49 = sphi 0, %s46
      %s50 = sphi 0, %s49
      %s66 = sphi 0, %s50
    $region4: #{maxpool2d_ceil.1} parent=1 // loop_header_branch
      %13 = sbr.rel (%p11) target = $region8
    $region5: #{maxpool2d_ceil.1} parent=1 // loop_body
      %s15 = ssub.s32 %s10, 1
      %s16 = ssub.s32 %s10, 2
      %s17 = sadd.s32 %s10, 1
      %s18 = ssub.s32 %s10, %s17
      %p19 = scmp.eq.s32.totalorder %s18, 0
      %s21 = sadd.s32 %s20, 1
      %s22 = scalar_select %p19, %s20, %s21
      %p25 = pneg %p19
      %p26 = scmp.eq.s32.totalorder %s10, 3
      %p27 = por %p25, %p26
      %p28 = scmp.ne.s32.totalorder %s20, %s23
      %p29 = scmp.eq.s32.totalorder %s10, 0
      %p30 = por %p28, %p29
      %p31 = scmp.ne.s32.totalorder %s20, %s23
      %p32 = scmp.eq.s32.totalorder %s15, 3
      %p33 = por %p31, %p32
      %p34 = scmp.ne.s32.totalorder %s23, %s24
      %p35 = scmp.eq.s32.totalorder %s15, 0
      %p36 = por %p34, %p35
      %p37 = scmp.ne.s32.totalorder %s23, %s24
      %p38 = scmp.eq.s32.totalorder %s16, 3
      %p39 = por %p37, %p38
      %p41 = scmp.ne.s32.totalorder %s24, %s40
      %p42 = scmp.eq.s32.totalorder %s16, 0
      %p43 = por %p41, %p42
      %s44 = ssub.s32 %s10, %s17
      %p45 = scmp.eq.s32.totalorder %s44, 0
      %s47 = sadd.s32 %s46, 1
      %s48 = scalar_select %p45, %s46, %s47
      %p51 = pneg %p45
      %p52 = scmp.eq.s32.totalorder %s10, 3
      %p53 = por %p51, %p52
      %p54 = scmp.ne.s32.totalorder %s46, %s49
      %p55 = scmp.eq.s32.totalorder %s10, 0
      %p56 = por %p54, %p55
      %p57 = scmp.ne.s32.totalorder %s46, %s49
      %p58 = scmp.eq.s32.totalorder %s15, 3
      %p59 = por %p57, %p58
      %p60 = scmp.ne.s32.totalorder %s49, %s50
      %p61 = scmp.eq.s32.totalorder %s15, 0
      %p62 = por %p60, %p61
      %p63 = scmp.ne.s32.totalorder %s49, %s50
      %p64 = scmp.eq.s32.totalorder %s16, 3
      %p65 = por %p63, %p64
      %p67 = scmp.ne.s32.totalorder %s50, %s66
      %p68 = scmp.eq.s32.totalorder %s16, 0
      %p69 = por %p67, %p68
      %p70 = scmp.le.s32.totalorder 1, %s10
      %p71 = scmp.lt.s32.totalorder %s10, 5
      %p72 = pnand %p70, %p71
      %p73 = pneg %p72
      // Predicated region
      $region9: #{maxpool2d_ceil.1} parent=5 // pred_check
        _
      $region10: #{maxpool2d_ceil.1} parent=5 // pred_check_branch
        %75 = sbr.rel (%p72) target = $region12
      $region11: #{maxpool2d_ceil.1} parent=5 // pred_region
        %s76 = ssub.s32 %s10, 1
      $region12: #{maxpool2d_ceil.1} parent=5 // pred_fallthru
        _
      %p77 = scmp.lt.s32.totalorder %s10, 4
      // Predicated region
      $region13: #{maxpool2d_ceil.1} parent=5 // pred_check
        %p78 = pneg %p77
      $region14: #{maxpool2d_ceil.1} parent=5 // pred_check_branch
        %80 = sbr.rel (%p78) target = $region16
      $region15: #{maxpool2d_ceil.1} parent=5 // pred_region
        // Predicated region
        $region17: #{maxpool2d_ceil.1} parent=15 // pred_check
          %p81 = pneg %p30
        $region18: #{maxpool2d_ceil.1} parent=15 // pred_check_branch
          %83 = sbr.rel (%p81) target = $region20
        $region19: #{maxpool2d_ceil.1} parent=15 // pred_region
          %s84 = sand.u32 %s20, 1
          %s85 = scalar_lea.sflag [#allocation3], %s84
          %s86 = sand.u32 %s20, 1
          %s87 = smul.addr %s86, 32
          %s88 = scalar_lea.vmem [#allocation2], %s87
          %s89 = smul.u32 2, %s10
          %s91 = ssub.s32 512, 512
          %92 = vsyncadd %s85, %s91
          %s93 = smul.addr %s89, 2
          %s94 = smul.addr %s93, 128
          %s95 = scalar_lea.hbm %s0, %s94
          %s96 = sshll.u32 %s88, 4
          %s97 = int_to_ptr.vmem [resolvable:$true] %s96
          %102 = dma.hbm_to_vmem [thread:$0]  %s95, 512, %s97, %s85, 128, 128, 8
        $region20: #{maxpool2d_ceil.1} parent=15 // pred_fallthru
          _
      $region16: #{maxpool2d_ceil.1} parent=5 // pred_fallthru
        _
      %p103 = scmp.le.s32.totalorder 1, %s10
      %p104 = scmp.lt.s32.totalorder %s10, 5
      %p105 = pnand %p103, %p104
      %p106 = pneg %p105
      // Predicated region
      $region21: #{maxpool2d_ceil.1} parent=5 // pred_check
        _
      $region22: #{maxpool2d_ceil.1} parent=5 // pred_check_branch
        %108 = sbr.rel (%p105) target = $region24
      $region23: #{maxpool2d_ceil.1} parent=5 // pred_region
        %s109 = ssub.s32 %s10, 1
        %s110 = sand.u32 %s23, 1
        %s111 = scalar_lea.sflag [#allocation3], %s110
        %s112 = sand.u32 %s23, 1
        %s113 = smul.addr %s112, 32
        %s114 = scalar_lea.vmem [#allocation2], %s113
        // Predicated region
        $region25: #{maxpool2d_ceil.1} parent=23 // pred_check
          %p115 = pneg %p36
        $region26: #{maxpool2d_ceil.1} parent=23 // pred_check_branch
          %117 = sbr.rel (%p115) target = $region28
        $region27: #{maxpool2d_ceil.1} parent=23 // pred_region
          %118 = dma.done %s111, 512
        $region28: #{maxpool2d_ceil.1} parent=23 // pred_fallthru
          _
        %s119 = sand.u32 %s23, 1
        %s120 = scalar_lea.sflag [#allocation3], %s119
        %s121 = sand.u32 %s23, 1
        %s122 = smul.addr %s121, 32
        %s123 = scalar_lea.vmem [#allocation2], %s122
        %p124 = pneg %p36
        %p125 = pneg %p33
        %p126 = pneg %p62
        %p127 = pneg %p59
        %s128 = smul.u32 2, %s15
        %p129 = scmp.lt.s32.totalorder %s128, 7
        %s130 = scalar_select %p129, %s128, 7
        %s131 = smul.addr %s130, 8
        %s132 = scalar_lea.vmem %s1, %s131
        %s133 = smul.u32 2, %s15
        %s134 = smul.u32 2, %s15
        %p135 = scmp.lt.s32.totalorder %s134, 7
        %s136 = scalar_select %p135, %s134, 7
        %s137 = smul.addr %s136, 8
        %s138 = scalar_lea.vmem %s1, %s137
        %s139 = smul.u32 2, %s15
        %v140 = vld [vmem:[%s114] sm:$0x7]
        %v141 = vld [vmem:[%s114 + $0x10] sm:$0x7]
        %vm142 = vcmask 124928
        %v143 = vsel %vm142, %v140, -inf
        %v144 = vrot.slane %v143, 4
        %v145 = vmax.f32 %v143, %v144
        %v146 = vrot.slane %v145, 2
        %v147 = vmax.f32 %v145, %v146
        %v148 = vrot.slane %v147, 1
        %v149 = vmax.f32 %v147, %v148
        %v150 = vsel %vm142, %v141, -inf
        %v151 = vrot.slane %v150, 4
        %v152 = vmax.f32 %v150, %v151
        %v153 = vrot.slane %v152, 2
        %v154 = vmax.f32 %v152, %v153
        %v155 = vrot.slane %v154, 1
        %v156 = vmax.f32 %v154, %v155
        %159 = vrot.lane.b32.xlu0 %v149, 127
        %v160 = vpop.permute.xlu0 %159
        %161 = vrot.lane.b32.xlu0 %v156, 127
        %v162 = vpop.permute.xlu0 %161
        %v165 = vmax.f32 %v149, %v160
        %v166 = vmax.f32 %v156, %v162
        %167 = vrot.lane.b32.xlu0 %v149, 126
        %v168 = vpop.permute.xlu0 %167
        %169 = vrot.lane.b32.xlu0 %v156, 126
        %v170 = vpop.permute.xlu0 %169
        %v173 = vmax.f32 %v165, %v168
        %v174 = vmax.f32 %v166, %v170
        %vm175 = vcmask 106496
        %176 = vst.msk [vmem:[%s138] sm:$0x1] %vm175, %v173
        %177 = vst.msk [vmem:[%s138 + $0x8] sm:$0x1] %vm175, %v174
        %vm178 = vcmask 123000
        %179 = vst.msk [vmem:[%s138] sm:$0x1] %vm178, %v149
        %180 = vst.msk [vmem:[%s138 + $0x8] sm:$0x1] %vm178, %v156
        %v181 = vld [vmem:[%s114 + $0x3] sm:$0x7]
        %v182 = vld [vmem:[%s114 + $0x13] sm:$0x7]
        %v183 = vsel %vm142, %v181, -inf
        %v184 = vrot.slane %v183, 4
        %v185 = vmax.f32 %v183, %v184
        %v186 = vrot.slane %v185, 2
        %v187 = vmax.f32 %v185, %v186
        %v188 = vrot.slane %v187, 1
        %v189 = vmax.f32 %v187, %v188
        %v190 = vsel %vm142, %v182, -inf
        %v191 = vrot.slane %v190, 4
        %v192 = vmax.f32 %v190, %v191
        %v193 = vrot.slane %v192, 2
        %v194 = vmax.f32 %v192, %v193
        %v195 = vrot.slane %v194, 1
        %v196 = vmax.f32 %v194, %v195
        %199 = vrot.lane.b32.xlu0 %v189, 127
        %v200 = vpop.permute.xlu0 %199
        %201 = vrot.lane.b32.xlu0 %v196, 127
        %v202 = vpop.permute.xlu0 %201
        %v205 = vmax.f32 %v189, %v200
        %v206 = vmax.f32 %v196, %v202
        %207 = vrot.lane.b32.xlu0 %v189, 126
        %v208 = vpop.permute.xlu0 %207
        %209 = vrot.lane.b32.xlu0 %v196, 126
        %v210 = vpop.permute.xlu0 %209
        %v213 = vmax.f32 %v205, %v208
        %v214 = vmax.f32 %v206, %v210
        %215 = vst.msk [vmem:[%s138 + $0x1] sm:$0x1] %vm175, %v213
        %216 = vst.msk [vmem:[%s138 + $0x9] sm:$0x1] %vm175, %v214
        %217 = vst.msk [vmem:[%s138 + $0x1] sm:$0x1] %vm178, %v189
        %218 = vst.msk [vmem:[%s138 + $0x9] sm:$0x1] %vm178, %v196
        %v219 = vld [vmem:[%s114 + $0x6] sm:$0x7]
        %v220 = vld [vmem:[%s114 + $0x16] sm:$0x7]
        %v221 = vsel %vm142, %v219, -inf
        %v222 = vrot.slane %v221, 4
        %v223 = vmax.f32 %v221, %v222
        %v224 = vrot.slane %v223, 2
        %v225 = vmax.f32 %v223, %v224
        %v226 = vrot.slane %v225, 1
        %v227 = vmax.f32 %v225, %v226
        %v228 = vsel %vm142, %v220, -inf
        %v229 = vrot.slane %v228, 4
        %v230 = vmax.f32 %v228, %v229
        %v231 = vrot.slane %v230, 2
        %v232 = vmax.f32 %v230, %v231
        %v233 = vrot.slane %v232, 1
        %v234 = vmax.f32 %v232, %v233
        %237 = vrot.lane.b32.xlu0 %v227, 127
        %v238 = vpop.permute.xlu0 %237
        %239 = vrot.lane.b32.xlu0 %v234, 127
        %v240 = vpop.permute.xlu0 %239
        %v243 = vmax.f32 %v227, %v238
        %v244 = vmax.f32 %v234, %v240
        %245 = vrot.lane.b32.xlu0 %v227, 126
        %v246 = vpop.permute.xlu0 %245
        %247 = vrot.lane.b32.xlu0 %v234, 126
        %v248 = vpop.permute.xlu0 %247
        %v251 = vmax.f32 %v243, %v246
        %v252 = vmax.f32 %v244, %v248
        %253 = vst.msk [vmem:[%s138 + $0x2] sm:$0x1] %vm175, %v251
        %254 = vst.msk [vmem:[%s138 + $0xa] sm:$0x1] %vm175, %v252
        %255 = vst.msk [vmem:[%s138 + $0x2] sm:$0x1] %vm178, %v227
        %256 = vst.msk [vmem:[%s138 + $0xa] sm:$0x1] %vm178, %v234
        %v257 = vld [vmem:[%s114 + $0x9] sm:$0x7]
        %v258 = vld [vmem:[%s114 + $0x19] sm:$0x7]
        %v259 = vsel %vm142, %v257, -inf
        %v260 = vrot.slane %v259, 4
        %v261 = vmax.f32 %v259, %v260
        %v262 = vrot.slane %v261, 2
        %v263 = vmax.f32 %v261, %v262
        %v264 = vrot.slane %v263, 1
        %v265 = vmax.f32 %v263, %v264
        %v266 = vsel %vm142, %v258, -inf
        %v267 = vrot.slane %v266, 4
        %v268 = vmax.f32 %v266, %v267
        %v269 = vrot.slane %v268, 2
        %v270 = vmax.f32 %v268, %v269
        %v271 = vrot.slane %v270, 1
        %v272 = vmax.f32 %v270, %v271
        %275 = vrot.lane.b32.xlu0 %v265, 127
        %v276 = vpop.permute.xlu0 %275
        %277 = vrot.lane.b32.xlu0 %v272, 127
        %v278 = vpop.permute.xlu0 %277
        %v281 = vmax.f32 %v265, %v276
        %v282 = vmax.f32 %v272, %v278
        %283 = vrot.lane.b32.xlu0 %v265, 126
        %v284 = vpop.permute.xlu0 %283
        %285 = vrot.lane.b32.xlu0 %v272, 126
        %v286 = vpop.permute.xlu0 %285
        %v289 = vmax.f32 %v281, %v284
        %v290 = vmax.f32 %v282, %v286
        %291 = vst.msk [vmem:[%s138 + $0x3] sm:$0x1] %vm175, %v289
        %292 = vst.msk [vmem:[%s138 + $0xb] sm:$0x1] %vm175, %v290
        %293 = vst.msk [vmem:[%s138 + $0x3] sm:$0x1] %vm178, %v265
        %294 = vst.msk [vmem:[%s138 + $0xb] sm:$0x1] %vm178, %v272
        %v295 = vld [vmem:[%s114 + $0xc] sm:$0x7]
        %v296 = vld [vmem:[%s114 + $0x1c] sm:$0x7]
        %v297 = vsel %vm142, %v295, -inf
        %v298 = vrot.slane %v297, 4
        %v299 = vmax.f32 %v297, %v298
        %v300 = vrot.slane %v299, 2
        %v301 = vmax.f32 %v299, %v300
        %v302 = vrot.slane %v301, 1
        %v303 = vmax.f32 %v301, %v302
        %v304 = vsel %vm142, %v296, -inf
        %v305 = vrot.slane %v304, 4
        %v306 = vmax.f32 %v304, %v305
        %v307 = vrot.slane %v306, 2
        %v308 = vmax.f32 %v306, %v307
        %v309 = vrot.slane %v308, 1
        %v310 = vmax.f32 %v308, %v309
        %313 = vrot.lane.b32.xlu0 %v303, 127
        %v314 = vpop.permute.xlu0 %313
        %315 = vrot.lane.b32.xlu0 %v310, 127
        %v316 = vpop.permute.xlu0 %315
        %v319 = vmax.f32 %v303, %v314
        %v320 = vmax.f32 %v310, %v316
        %321 = vrot.lane.b32.xlu0 %v303, 126
        %v322 = vpop.permute.xlu0 %321
        %323 = vrot.lane.b32.xlu0 %v310, 126
        %v324 = vpop.permute.xlu0 %323
        %v327 = vmax.f32 %v319, %v322
        %v328 = vmax.f32 %v320, %v324
        %329 = vst.msk [vmem:[%s138 + $0x4] sm:$0x1] %vm175, %v327
        %330 = vst.msk [vmem:[%s138 + $0xc] sm:$0x1] %vm175, %v328
        %331 = vst.msk [vmem:[%s138 + $0x4] sm:$0x1] %vm178, %v303
        %332 = vst.msk [vmem:[%s138 + $0xc] sm:$0x1] %vm178, %v310
        %v333 = vld [vmem:[%s114 + $0xf] sm:$0x1]
        %v334 = vld [vmem:[%s114 + $0x1f] sm:$0x1]
        %337 = vrot.lane.b32.xlu0 %v333, 127
        %v338 = vpop.permute.xlu0 %337
        %339 = vrot.lane.b32.xlu0 %v334, 127
        %v340 = vpop.permute.xlu0 %339
        %v343 = vmax.f32 %v333, %v338
        %v344 = vmax.f32 %v334, %v340
        %345 = vrot.lane.b32.xlu0 %v333, 126
        %v346 = vpop.permute.xlu0 %345
        %347 = vrot.lane.b32.xlu0 %v334, 126
        %v348 = vpop.permute.xlu0 %347
        %v351 = vmax.f32 %v343, %v346
        %v352 = vmax.f32 %v344, %v348
        %353 = vst.msk [vmem:[%s138 + $0x5] sm:$0x1] %vm175, %v351
        %354 = vst.msk [vmem:[%s138 + $0xd] sm:$0x1] %vm175, %v352
        %355 = vst.msk [vmem:[%s138 + $0x5] sm:$0x1] %vm178, %v333
        %356 = vst.msk [vmem:[%s138 + $0xd] sm:$0x1] %vm178, %v334
        %s357 = smul.u32 2, %s15
        %p358 = scmp.lt.s32.totalorder %s357, 7
        %s359 = scalar_select %p358, %s357, 7
        %s360 = smul.addr %s359, 8
        %s361 = scalar_lea.vmem %s1, %s360
        // Predicated region
        $region29: #{maxpool2d_ceil.1} parent=23 // pred_check
          %p362 = pneg %p59
        $region30: #{maxpool2d_ceil.1} parent=23 // pred_check_branch
          %364 = sbr.rel (%p362) target = $region32
        $region31: #{maxpool2d_ceil.1} parent=23 // pred_region
          %s365 = smul.u32 2, %s15
        $region32: #{maxpool2d_ceil.1} parent=23 // pred_fallthru
          _
      $region24: #{maxpool2d_ceil.1} parent=5 // pred_fallthru
        _
      %p366 = scmp.le.s32.totalorder 2, %s10
      // Predicated region
      $region33: #{maxpool2d_ceil.1} parent=5 // pred_check
        %p367 = pneg %p366
      $region34: #{maxpool2d_ceil.1} parent=5 // pred_check_branch
        %369 = sbr.rel (%p367) target = $region36
      $region35: #{maxpool2d_ceil.1} parent=5 // pred_region
        %s370 = ssub.s32 %s10, 2
        // Predicated region
        $region37: #{maxpool2d_ceil.1} parent=35 // pred_check
          %p371 = pneg %p65
        $region38: #{maxpool2d_ceil.1} parent=35 // pred_check_branch
          %373 = sbr.rel (%p371) target = $region40
        $region39: #{maxpool2d_ceil.1} parent=35 // pred_region
          %s374 = smul.u32 2, %s16
          %p375 = scmp.lt.s32.totalorder %s374, 7
          %s376 = scalar_select %p375, %s374, 7
          %s377 = smul.addr %s376, 8
          %s378 = scalar_lea.vmem %s1, %s377
        $region40: #{maxpool2d_ceil.1} parent=35 // pred_fallthru
          _
      $region36: #{maxpool2d_ceil.1} parent=5 // pred_fallthru
        _
    $region6: #{maxpool2d_ceil.1} parent=1 // loop_footer
      %s14 = sadd.s32 1, %s10
    $region7: #{maxpool2d_ceil.1} parent=1 // loop_footer_branch
      %9 = sbr.rel target = $region3
    $region8: #{maxpool2d_ceil.1} parent=1 // loop_exit
      _
    %379 = vsyncpa [#allocation3], 1
    %s380 = scalar_lea.sflag [#allocation3], 1
    %381 = vsyncpa %s380, 1

</llo_original>
